<compile_context>
chip_gen: v6e
topology: v6e:2x2x1
jax: 0.10.0
libtpu: 0.0.40
codegen_flags: <defaults>
</compile_context>

<pallas_src>
import functools

import jax
import jax.numpy as jnp
import numpy as np
from jax.experimental import pallas as pl
from jax.experimental.pallas import tpu as pltpu


# ---------------------------------------------------------------------------
# Kernel: one batch tile runs the whole fc1 -> relu -> fc2 -> relu -> fc3 -> +skip chain.
# ---------------------------------------------------------------------------
def combinet_kernel(x_ref, w1_ref, b1_ref, w2_ref, b2_ref, w3_ref, b3_ref, o_ref):
    x = x_ref[...]                                  # (tb, in_dim)
    cd = w1_ref.dtype                               # MXU operand dtype (f32 or bf16)

    h1 = jnp.dot(x.astype(cd), w1_ref[...],
                 preferred_element_type=jnp.float32) + b1_ref[...]
    h1 = jnp.maximum(h1, 0.0)                       # ReLU in f32 on the VPU

    h2 = jnp.dot(h1.astype(cd), w2_ref[...],
                 preferred_element_type=jnp.float32) + b2_ref[...]
    h2 = jnp.maximum(h2, 0.0)

    out = jnp.dot(h2.astype(cd), w3_ref[...],
                  preferred_element_type=jnp.float32) + b3_ref[...]

    # Residual skip reuses the already-loaded x vregs; out_dim is a multiple of 128
    # -> unmasked full-width vst.
    o_ref[...] = (out + x.astype(jnp.float32)).astype(o_ref.dtype)


# ---------------------------------------------------------------------------
# Hardware / capability queries
# ---------------------------------------------------------------------------
def _device_info():
    """(is_v7x, physical VMEM bytes per TensorCore), with safe fallbacks."""
    kind = ""
    try:
        kind = (jax.devices()[0].device_kind or "").lower()
    except Exception:
        pass
    is_v7 = "v7" in kind
    try:
        vmem_phys = int(pltpu.get_tpu_info().vmem_capacity_bytes)
    except Exception:
        vmem_phys = (64 if is_v7 else 128) * 1024 * 1024
    return is_v7, vmem_phys


@functools.lru_cache(maxsize=None)
def _buffered_pipeline_supported():
    """Narrow, one-shot capability probe: does pipeline_mode=pl.Buffered(n) exist AND
    lower through Mosaic?  Only this tiny throwaway kernel is guarded; the real kernel
    is never wrapped in a try/except."""
    if not hasattr(pl, "Buffered"):
        return False
    try:
        inv_spec = pl.BlockSpec((8, 128), lambda i: (0, 0),
                                pipeline_mode=pl.Buffered(1))
    except TypeError:
        return False
    try:
        def _probe(w_ref, x_ref, o_ref):
            o_ref[...] = x_ref[...] + w_ref[...]

        f = pl.pallas_call(
            _probe,
            out_shape=jax.ShapeDtypeStruct((16, 128), jnp.float32),
            grid_spec=pl.GridSpec(
                grid=(2,),
                in_specs=[inv_spec, pl.BlockSpec((8, 128), lambda i: (i, 0))],
                out_specs=pl.BlockSpec((8, 128), lambda i: (i, 0)),
            ),
        )
        jax.jit(f).lower(jnp.zeros((8, 128), jnp.float32),
                         jnp.zeros((16, 128), jnp.float32)).compile()
        return True
    except Exception:
        return False


# ---------------------------------------------------------------------------
# Wrapper
# ---------------------------------------------------------------------------
def combinet_forward(x, params, *, tb=None, interpret=False):
    """x: (B, in_dim).  params: w1,b1,w2,b2,w3,b3 with weights stored (in, out) so the
    kernel computes x @ W.  Weights / activations may be f32 or bf16; accumulation,
    bias, ReLU and the residual add are always f32."""
    B, in_dim = x.shape
    h2x = params["w1"].shape[1]                     # 2 * hidden_units
    out_dim = params["w3"].shape[1]
    assert out_dim == in_dim, "residual skip requires out_dim == in_dim"

    act_bytes = jnp.dtype(x.dtype).itemsize
    w_bytes = jnp.dtype(params["w1"].dtype).itemsize
    b_bytes = jnp.dtype(params["b1"].dtype).itemsize

    is_v7, vmem_phys = _device_info()
    buffered_ok = (not interpret) and _buffered_pipeline_supported()

    # ---- batch-tile selection: MXU-aligned, generation & VMEM aware ----------------
    MXU_ROWS = 256                                  # multiple of 128 -> also fine on v5e
    SUBLANE = 16 if act_bytes < 4 else 8            # bf16 needs 16-row packing
    tb_sel = min(1024 if tb is None else int(tb), B)
    if is_v7 and B >= 2 * MXU_ROWS:
        # keep >= 2 grid steps so the "parallel" axis shards over both TensorCores
        tb_sel = min(tb_sel, max(MXU_ROWS, (B // 2) // MXU_ROWS * MXU_ROWS))
    if tb_sel >= MXU_ROWS:
        tb_sel -= tb_sel % MXU_ROWS
    else:
        tb_sel = max(SUBLANE, tb_sel - tb_sel % SUBLANE)

    weight_bytes = ((in_dim * h2x + h2x * h2x + h2x * out_dim) * w_bytes
                    + (2 * h2x + out_dim) * b_bytes)

    def vmem_need(t, x_bufs):
        return (weight_bytes * (1 if buffered_ok else 2)         # resident weights
                + x_bufs * t * in_dim * act_bytes                # x pipeline buffers
                + 2 * t * out_dim * act_bytes                    # out double-buffer
                + t * (2 * h2x + out_dim) * 4)                   # f32 intermediates

    budget = int(0.75 * vmem_phys)                  # headroom for Mosaic internal scratch
    while vmem_need(tb_sel, 3 if buffered_ok else 2) > budget and tb_sel > SUBLANE:
        if tb_sel > MXU_ROWS:
            tb_sel -= MXU_ROWS
        else:
            tb_sel = max(SUBLANE, (tb_sel // 2) // SUBLANE * SUBLANE)

    num_steps = pl.cdiv(B, tb_sel)
    grid = (num_steps,)

    # Pipeline modes: weights/biases single-buffered (grid-invariant); deepen the x
    # pipeline only when the grid is long enough for it to matter.
    x_bufs = 3 if (buffered_ok and num_steps >= 4) else 2
    w_kw = {"pipeline_mode": pl.Buffered(1)} if buffered_ok else {}
    x_kw = {"pipeline_mode": pl.Buffered(3)} if x_bufs == 3 else {}

    vmem_limit = max(16 * 1024 * 1024,
                     min(budget, vmem_need(tb_sel, x_bufs) + 8 * 1024 * 1024))

    # Advisory cost estimate so XLA can overlap the custom call with neighbors.
    flops = 2 * int(num_steps) * tb_sel * (in_dim * h2x + h2x * h2x + h2x * out_dim)
    bytes_accessed = B * (in_dim + out_dim) * act_bytes + weight_bytes
    cost = pl.CostEstimate(flops=flops, transcendentals=0,
                           bytes_accessed=int(bytes_accessed))

    inv = lambda i: (0, 0)                          # grid-invariant weights / biases

    fwd = pl.pallas_call(
        combinet_kernel,
        out_shape=jax.ShapeDtypeStruct((B, out_dim), x.dtype),
        grid_spec=pl.GridSpec(
            grid=grid,
            in_specs=[
                pl.BlockSpec((tb_sel, in_dim), lambda i: (i, 0), **x_kw),   # x (batch tiled)
                pl.BlockSpec((in_dim, h2x), inv, **w_kw),                   # w1
                pl.BlockSpec((1, h2x), inv, **w_kw),                        # b1
                pl.BlockSpec((h2x, h2x), inv, **w_kw),                      # w2
                pl.BlockSpec((1, h2x), inv, **w_kw),                        # b2
                pl.BlockSpec((h2x, out_dim), inv, **w_kw),                  # w3
                pl.BlockSpec((1, out_dim), inv, **w_kw),                    # b3
            ],
            out_specs=pl.BlockSpec((tb_sel, out_dim), lambda i: (i, 0)),
        ),
        compiler_params=pltpu.CompilerParams(
            dimension_semantics=("parallel",),      # megacore-shardable on v7x
            vmem_limit_bytes=int(vmem_limit),
        ),
        cost_estimate=cost,
        interpret=interpret,
    )
    # Ragged B: grid = cdiv(B, tb); Pallas pads the tail block's reads and drops OOB
    # writes -- no jnp.pad / slice HBM passes needed (rows are fully independent).
    return fwd(x, params["w1"], params["b1"], params["w2"], params["b2"],
               params["w3"], params["b3"])


# ---------------------------------------------------------------------------
# Init / reference (mirror of the PyTorch module)
# ---------------------------------------------------------------------------
def init_params(key, in_dim, hidden_units, out_dim, dtype=jnp.float32):
    """xavier_normal_(gain=sqrt(2)) weights, nn.Linear default uniform biases.
    Weights stored (in, out) so the kernel does x @ W."""
    h2x = 2 * hidden_units
    keys = jax.random.split(key, 6)

    def xavier_normal(k, fan_in, fan_out, gain):
        std = gain * np.sqrt(2.0 / (fan_in + fan_out))
        return (std * jax.random.normal(k, (fan_in, fan_out), dtype=jnp.float32)).astype(dtype)

    def bias_uniform(k, fan_in, fan_out):
        bound = 1.0 / np.sqrt(fan_in)
        return jax.random.uniform(k, (1, fan_out), dtype=jnp.float32,
                                  minval=-bound, maxval=bound)

    gain = np.sqrt(2.0)
    return {
        "w1": xavier_normal(keys[0], in_dim, h2x, gain),
        "b1": bias_uniform(keys[1], in_dim, h2x),
        "w2": xavier_normal(keys[2], h2x, h2x, gain),
        "b2": bias_uniform(keys[3], h2x, h2x),
        "w3": xavier_normal(keys[4], h2x, out_dim, gain),
        "b3": bias_uniform(keys[5], h2x, out_dim),
    }


def combinet_reference(x, p):
    h1 = jnp.maximum(x @ p["w1"].astype(jnp.float32) + p["b1"], 0.0)
    h2 = jnp.maximum(h1 @ p["w2"].astype(jnp.float32) + p["b2"], 0.0)
    return h2 @ p["w3"].astype(jnp.float32) + p["b3"] + x


if __name__ == "__main__":
    # Small shapes consistent with the module's structure (in_dim == out_dim).
    B, in_dim, hidden_units = 16, 256, 64
    out_dim = in_dim

    key = jax.random.PRNGKey(0)
    kx, kp = jax.random.split(key)
    x = jax.random.normal(kx, (B, in_dim), dtype=jnp.float32)
    params = init_params(kp, in_dim, hidden_units, out_dim)

    ref = jax.block_until_ready(combinet_reference(x, params))

    # f32 path: exact module semantics.
    out_f32 = jax.block_until_ready(combinet_forward(x, params))
    np.testing.assert_allclose(np.asarray(out_f32), np.asarray(ref),
                               rtol=1e-5, atol=1e-5)

    # Ragged batch (B not a multiple of tb): exercises the masked tail block with no
    # pad / slice wrapper copies.
    B2 = 40
    x2 = jax.random.normal(jax.random.PRNGKey(1), (B2, in_dim), dtype=jnp.float32)
    ref2 = jax.block_until_ready(combinet_reference(x2, params))
    out2 = jax.block_until_ready(combinet_forward(x2, params, tb=16))
    np.testing.assert_allclose(np.asarray(out2), np.asarray(ref2),
                               rtol=1e-5, atol=1e-5)

    # bf16 MXU-operand / f32-accumulate path (halves weight DMA, faster MXU on v6e/v7x).
    # TODO(synk): on v7x a quantized-weight variant should target fp8, not int8.
    params_bf16 = {k: (v.astype(jnp.bfloat16) if k.startswith("w") else v)
                   for k, v in params.items()}
    out_bf16 = jax.block_until_ready(combinet_forward(x, params_bf16))
    np.testing.assert_allclose(np.asarray(out_bf16), np.asarray(ref),
                               rtol=5e-2, atol=5e-2)

    print("KERNEL_OK")
</pallas_src>

<mosaic_0001>
module attributes {stable_mosaic.version = 11 : i64} {
  func.func @combinet_kernel(%arg0: i32, %arg1: memref<16x256xf32, #tpu.memory_space<vmem>>, %arg2: memref<256x128xf32, #tpu.memory_space<vmem>>, %arg3: memref<1x128xf32, #tpu.memory_space<vmem>>, %arg4: memref<128x128xf32, #tpu.memory_space<vmem>>, %arg5: memref<1x128xf32, #tpu.memory_space<vmem>>, %arg6: memref<128x256xf32, #tpu.memory_space<vmem>>, %arg7: memref<1x256xf32, #tpu.memory_space<vmem>>, %arg8: memref<16x256xf32, #tpu.memory_space<vmem>>) attributes {dimension_semantics = [#tpu.dimension_semantics<parallel>], iteration_bounds = array<i64: 1>, scalar_prefetch = 0 : i64, scratch_operands = 0 : i64, tpu.core_type = #tpu.core_type<tc>, window_params = [{transform_indices = @transform_0, window_bounds = array<i64: 16, 256>}, {pipeline_mode = #tpu.pipeline_mode<synchronous>, transform_indices = @transform_1, window_bounds = array<i64: 256, 128>}, {pipeline_mode = #tpu.pipeline_mode<synchronous>, transform_indices = @transform_2, window_bounds = array<i64: 1, 128>}, {pipeline_mode = #tpu.pipeline_mode<synchronous>, transform_indices = @transform_3, window_bounds = array<i64: 128, 128>}, {pipeline_mode = #tpu.pipeline_mode<synchronous>, transform_indices = @transform_4, window_bounds = array<i64: 1, 128>}, {pipeline_mode = #tpu.pipeline_mode<synchronous>, transform_indices = @transform_5, window_bounds = array<i64: 128, 256>}, {pipeline_mode = #tpu.pipeline_mode<synchronous>, transform_indices = @transform_6, window_bounds = array<i64: 1, 256>}, {transform_indices = @transform_7, window_bounds = array<i64: 16, 256>}]} {
    %c0 = arith.constant 0 : index
    %c0_0 = arith.constant 0 : index
    %0 = vector.load %arg1[%c0, %c0_0] : memref<16x256xf32, #tpu.memory_space<vmem>>, vector<16x256xf32>
    %c0_1 = arith.constant 0 : index
    %c0_2 = arith.constant 0 : index
    %1 = vector.load %arg2[%c0_1, %c0_2] : memref<256x128xf32, #tpu.memory_space<vmem>>, vector<256x128xf32>
    %cst = arith.constant dense<0.000000e+00> : vector<16x128xf32>
    %2 = tpu.matmul %0, %1, %cst {dimension_numbers = #tpu.dot_dimension_numbers<[1], [0], [0], [1], [0, 0, 1, 1], [], []>} : vector<16x256xf32>, vector<256x128xf32>, vector<16x128xf32> -> vector<16x128xf32>
    %c0_3 = arith.constant 0 : index
    %c0_4 = arith.constant 0 : index
    %3 = vector.load %arg3[%c0_3, %c0_4] : memref<1x128xf32, #tpu.memory_space<vmem>>, vector<1x128xf32>
    %4 = vector.broadcast %3 : vector<1x128xf32> to vector<16x128xf32>
    %5 = arith.addf %2, %4 : vector<16x128xf32>
    %cst_5 = arith.constant 0.000000e+00 : f32
    %6 = vector.broadcast %cst_5 : f32 to vector<16x128xf32>
    %7 = arith.maximumf %5, %6 : vector<16x128xf32>
    %c0_6 = arith.constant 0 : index
    %c0_7 = arith.constant 0 : index
    %8 = vector.load %arg4[%c0_6, %c0_7] : memref<128x128xf32, #tpu.memory_space<vmem>>, vector<128x128xf32>
    %cst_8 = arith.constant dense<0.000000e+00> : vector<16x128xf32>
    %9 = tpu.matmul %7, %8, %cst_8 {dimension_numbers = #tpu.dot_dimension_numbers<[1], [0], [0], [1], [0, 0, 1, 1], [], []>} : vector<16x128xf32>, vector<128x128xf32>, vector<16x128xf32> -> vector<16x128xf32>
    %c0_9 = arith.constant 0 : index
    %c0_10 = arith.constant 0 : index
    %10 = vector.load %arg5[%c0_9, %c0_10] : memref<1x128xf32, #tpu.memory_space<vmem>>, vector<1x128xf32>
    %11 = vector.broadcast %10 : vector<1x128xf32> to vector<16x128xf32>
    %12 = arith.addf %9, %11 : vector<16x128xf32>
    %cst_11 = arith.constant 0.000000e+00 : f32
    %13 = vector.broadcast %cst_11 : f32 to vector<16x128xf32>
    %14 = arith.maximumf %12, %13 : vector<16x128xf32>
    %c0_12 = arith.constant 0 : index
    %c0_13 = arith.constant 0 : index
    %15 = vector.load %arg6[%c0_12, %c0_13] : memref<128x256xf32, #tpu.memory_space<vmem>>, vector<128x256xf32>
    %cst_14 = arith.constant dense<0.000000e+00> : vector<16x256xf32>
    %16 = tpu.matmul %14, %15, %cst_14 {dimension_numbers = #tpu.dot_dimension_numbers<[1], [0], [0], [1], [0, 0, 1, 1], [], []>} : vector<16x128xf32>, vector<128x256xf32>, vector<16x256xf32> -> vector<16x256xf32>
    %c0_15 = arith.constant 0 : index
    %c0_16 = arith.constant 0 : index
    %17 = vector.load %arg7[%c0_15, %c0_16] : memref<1x256xf32, #tpu.memory_space<vmem>>, vector<1x256xf32>
    %18 = vector.broadcast %17 : vector<1x256xf32> to vector<16x256xf32>
    %19 = arith.addf %16, %18 : vector<16x256xf32>
    %20 = arith.addf %19, %0 : vector<16x256xf32>
    %c0_17 = arith.constant 0 : index
    %c0_18 = arith.constant 0 : index
    %21 = vector.load %arg8[%c0_17, %c0_18] : memref<16x256xf32, #tpu.memory_space<vmem>>, vector<16x256xf32>
    tpu.vector_store %arg8[%c0_17, %c0_18], %20 {strides = array<i32>} : memref<16x256xf32, #tpu.memory_space<vmem>>, vector<16x256xf32>,
    return
  }
  func.func @transform_0(%arg0: i32) -> (i32, i32) {
    %c0_i32 = arith.constant 0 : i32
    %c0_i32_0 = arith.constant 0 : i32
    return %arg0, %c0_i32 : i32, i32
  }
  func.func @transform_1(%arg0: i32) -> (i32, i32) {
    %c0_i32 = arith.constant 0 : i32
    %c0_i32_0 = arith.constant 0 : i32
    %c0_i32_1 = arith.constant 0 : i32
    return %c0_i32, %c0_i32_0 : i32, i32
  }
  func.func @transform_2(%arg0: i32) -> (i32, i32) {
    %c0_i32 = arith.constant 0 : i32
    %c0_i32_0 = arith.constant 0 : i32
    %c0_i32_1 = arith.constant 0 : i32
    return %c0_i32, %c0_i32_0 : i32, i32
  }
  func.func @transform_3(%arg0: i32) -> (i32, i32) {
    %c0_i32 = arith.constant 0 : i32
    %c0_i32_0 = arith.constant 0 : i32
    %c0_i32_1 = arith.constant 0 : i32
    return %c0_i32, %c0_i32_0 : i32, i32
  }
  func.func @transform_4(%arg0: i32) -> (i32, i32) {
    %c0_i32 = arith.constant 0 : i32
    %c0_i32_0 = arith.constant 0 : i32
    %c0_i32_1 = arith.constant 0 : i32
    return %c0_i32, %c0_i32_0 : i32, i32
  }
  func.func @transform_5(%arg0: i32) -> (i32, i32) {
    %c0_i32 = arith.constant 0 : i32
    %c0_i32_0 = arith.constant 0 : i32
    %c0_i32_1 = arith.constant 0 : i32
    return %c0_i32, %c0_i32_0 : i32, i32
  }
  func.func @transform_6(%arg0: i32) -> (i32, i32) {
    %c0_i32 = arith.constant 0 : i32
    %c0_i32_0 = arith.constant 0 : i32
    %c0_i32_1 = arith.constant 0 : i32
    return %c0_i32, %c0_i32_0 : i32, i32
  }
  func.func @transform_7(%arg0: i32) -> (i32, i32) {
    %c0_i32 = arith.constant 0 : i32
    %c0_i32_0 = arith.constant 0 : i32
    return %arg0, %c0_i32 : i32, i32
  }
}

</mosaic_0001>

<llo_original>
// kernel: tpu_custom_call.1
$region0: #{tpu_custom_call.1}
  #allocation0 [shape = 'u32[]', space=smem, size = 0x4, offset = 0x4, fixed_abs, tag = 'smem constant byte address 0x4 - core index']
  #allocation1 [shape = 'u32[144,128]{1,0:T(1,128)}', space=vmem, size = 0x12000, scoped, tag = 'internal scratch']
  %s0 = inlined_call_operand.hbm [shape: f32[16,256], index: 0, kind: input, shape index: {}]
  %s1 = inlined_call_operand.hbm [shape: f32[256,128], index: 1, kind: input, shape index: {}]
  %s2 = inlined_call_operand.vmem [shape: f32[1,128], index: 2, kind: input, shape index: {}]
  %s3 = inlined_call_operand.hbm [shape: f32[128,128], index: 3, kind: input, shape index: {}]
  %s4 = inlined_call_operand.vmem [shape: f32[1,128], index: 4, kind: input, shape index: {}]
  %s5 = inlined_call_operand.hbm [shape: f32[128,256], index: 5, kind: input, shape index: {}]
  %s6 = inlined_call_operand.vmem [shape: f32[1,256], index: 6, kind: input, shape index: {}]
  %s7 = inlined_call_operand.hbm [shape: f32[16,256], index: 7, kind: output, shape index: {}]
  %s8 = sld [smem:[#allocation0]]
  $region54: #{tpu_custom_call.1} parent=0
    _
  %s10 = ssub.s32 1, %s8
  %s11 = scalar_select 0, %s10, %s8
  $region1: #{tpu_custom_call.1} parent=0
    #allocation2 [shape = 'u8[16384]{0}', space=vmem, size = 0x4000, scoped, tag = 'input window, operand 0, single buffered']
    #allocation3 [shape = 's32[1]{0}', space=sflag, size = 0x4, scoped, tag = 'scoped memory for tpu_custom_call.1']
    #allocation4 [shape = 's32[1]{0}', space=sflag, size = 0x4, scoped, tag = 'scoped memory for tpu_custom_call.1']
    #allocation5 [shape = 'u8[131072]{0}', space=vmem, size = 0x20000, scoped, tag = 'input window, operand 1, single buffered']
    #allocation6 [shape = 's32[1]{0}', space=sflag, size = 0x4, scoped, tag = 'scoped memory for tpu_custom_call.1']
    #allocation7 [shape = 'u8[65536]{0}', space=vmem, size = 0x10000, scoped, tag = 'input window, operand 3, single buffered']
    #allocation8 [shape = 'u8[131072]{0}', space=vmem, size = 0x20000, scoped, tag = 'input window, operand 5, single buffered']
    #allocation9 [shape = 's32[1]{0}', space=sflag, size = 0x4, scoped, tag = 'scoped memory for tpu_custom_call.1']
    #allocation10 [shape = 'u8[16384]{0}', space=vmem, size = 0x4000, scoped, tag = 'output window, operand 0, single buffered']
    %12 = vsyncpa [#allocation3], 0
    %13 = vsyncpa [#allocation6], 0
    %14 = vsyncpa [#allocation9], 0
    %15 = vsyncpa [#allocation4], 0
    // Predicated region
    $region2: #{tpu_custom_call.1} parent=1 // pred_check
      _
    $region3: #{tpu_custom_call.1} parent=1 // pred_check_branch
      %17 = sbr.rel (0) target = $region5
    $region4: #{tpu_custom_call.1} parent=1 // pred_region
      %s19 = ssub.s32 512, 512
      %20 = vsyncadd [#allocation3], %s19
      %s21 = sshll.u32 [#allocation2], 4
      %s22 = int_to_ptr.vmem [resolvable:$true] %s21
      %27 = dma.hbm_to_vmem [thread:$0]  %s0, 512, %s22, [#allocation3], 256, 256, 16
    $region5: #{tpu_custom_call.1} parent=1 // pred_fallthru
      _
    // Predicated region
    $region6: #{tpu_custom_call.1} parent=1 // pred_check
      _
    $region7: #{tpu_custom_call.1} parent=1 // pred_check_branch
      %29 = sbr.rel (0) target = $region9
    $region8: #{tpu_custom_call.1} parent=1 // pred_region
      %s31 = ssub.s32 4096, 4096
      %32 = vsyncadd [#allocation6], %s31
      %s33 = sshll.u32 [#allocation5], 4
      %s34 = int_to_ptr.vmem [resolvable:$true] %s33
      %39 = dma.hbm_to_vmem [thread:$0]  %s1, 4096, %s34, [#allocation6], 128, 128, 8
    $region9: #{tpu_custom_call.1} parent=1 // pred_fallthru
      _
    // Predicated region
    $region10: #{tpu_custom_call.1} parent=1 // pred_check
      _
    $region11: #{tpu_custom_call.1} parent=1 // pred_check_branch
      %41 = sbr.rel (0) target = $region13
    $region12: #{tpu_custom_call.1} parent=1 // pred_region
      _
    $region13: #{tpu_custom_call.1} parent=1 // pred_fallthru
      _
    // Predicated region
    $region14: #{tpu_custom_call.1} parent=1 // pred_check
      _
    $region15: #{tpu_custom_call.1} parent=1 // pred_check_branch
      %43 = sbr.rel (0) target = $region17
    $region16: #{tpu_custom_call.1} parent=1 // pred_region
      %s45 = ssub.s32 2048, 2048
      %46 = vsyncadd [#allocation6], %s45
      %s47 = sshll.u32 [#allocation7], 4
      %s48 = int_to_ptr.vmem [resolvable:$true] %s47
      %53 = dma.hbm_to_vmem [thread:$0]  %s3, 2048, %s48, [#allocation6], 128, 128, 8
    $region17: #{tpu_custom_call.1} parent=1 // pred_fallthru
      _
    // Predicated region
    $region18: #{tpu_custom_call.1} parent=1 // pred_check
      _
    $region19: #{tpu_custom_call.1} parent=1 // pred_check_branch
      %55 = sbr.rel (0) target = $region21
    $region20: #{tpu_custom_call.1} parent=1 // pred_region
      _
    $region21: #{tpu_custom_call.1} parent=1 // pred_fallthru
      _
    // Predicated region
    $region22: #{tpu_custom_call.1} parent=1 // pred_check
      _
    $region23: #{tpu_custom_call.1} parent=1 // pred_check_branch
      %57 = sbr.rel (0) target = $region25
    $region24: #{tpu_custom_call.1} parent=1 // pred_region
      %s59 = ssub.s32 4096, 4096
      %60 = vsyncadd [#allocation9], %s59
      %s61 = sshll.u32 [#allocation8], 4
      %s62 = int_to_ptr.vmem [resolvable:$true] %s61
      %67 = dma.hbm_to_vmem [thread:$0]  %s5, 4096, %s62, [#allocation9], 256, 256, 16
    $region25: #{tpu_custom_call.1} parent=1 // pred_fallthru
      _
    // Predicated region
    $region26: #{tpu_custom_call.1} parent=1 // pred_check
      _
    $region27: #{tpu_custom_call.1} parent=1 // pred_check_branch
      %69 = sbr.rel (0) target = $region29
    $region28: #{tpu_custom_call.1} parent=1 // pred_region
      _
    $region29: #{tpu_custom_call.1} parent=1 // pred_fallthru
      _
    // Predicated region
    $region30: #{tpu_custom_call.1} parent=1 // pred_check
      _
    $region31: #{tpu_custom_call.1} parent=1 // pred_check_branch
      %71 = sbr.rel (0) target = $region33
    $region32: #{tpu_custom_call.1} parent=1 // pred_region
      %72 = dma.done [#allocation3], 512
    $region33: #{tpu_custom_call.1} parent=1 // pred_fallthru
      _
    // Predicated region
    $region34: #{tpu_custom_call.1} parent=1 // pred_check
      _
    $region35: #{tpu_custom_call.1} parent=1 // pred_check_branch
      %74 = sbr.rel (0) target = $region37
    $region36: #{tpu_custom_call.1} parent=1 // pred_region
      %75 = dma.done [#allocation6], 4096
    $region37: #{tpu_custom_call.1} parent=1 // pred_fallthru
      _
    // Predicated region
    $region38: #{tpu_custom_call.1} parent=1 // pred_check
      _
    $region39: #{tpu_custom_call.1} parent=1 // pred_check_branch
      %77 = sbr.rel (0) target = $region41
    $region40: #{tpu_custom_call.1} parent=1 // pred_region
      %78 = dma.done [#allocation6], 2048
    $region41: #{tpu_custom_call.1} parent=1 // pred_fallthru
      _
    // Predicated region
    $region42: #{tpu_custom_call.1} parent=1 // pred_check
      _
    $region43: #{tpu_custom_call.1} parent=1 // pred_check_branch
      %80 = sbr.rel (0) target = $region45
    $region44: #{tpu_custom_call.1} parent=1 // pred_region
      %81 = dma.done [#allocation9], 4096
    $region45: #{tpu_custom_call.1} parent=1 // pred_fallthru
      _
    %v82 = vld [vmem:[#allocation2] sm:$0xff]
    %v83 = vld [vmem:[#allocation2 + $0x8] sm:$0xff]
    %v84 = vld [vmem:[#allocation2 + $0x10] sm:$0xff]
    %v85 = vld [vmem:[#allocation2 + $0x18] sm:$0xff]
    %v86 = vld [vmem:[#allocation5] sm:$0xff]
    %v87 = vld [vmem:[#allocation5 + $0x8] sm:$0xff]
    %v88 = vld [vmem:[#allocation5 + $0x10] sm:$0xff]
    %v89 = vld [vmem:[#allocation5 + $0x18] sm:$0xff]
    %v90 = vld [vmem:[#allocation5 + $0x20] sm:$0xff]
    %v91 = vld [vmem:[#allocation5 + $0x28] sm:$0xff]
    %v92 = vld [vmem:[#allocation5 + $0x30] sm:$0xff]
    %v93 = vld [vmem:[#allocation5 + $0x38] sm:$0xff]
    %v94 = vld [vmem:[#allocation5 + $0x40] sm:$0xff]
    %v95 = vld [vmem:[#allocation5 + $0x48] sm:$0xff]
    %v96 = vld [vmem:[#allocation5 + $0x50] sm:$0xff]
    %v97 = vld [vmem:[#allocation5 + $0x58] sm:$0xff]
    %v98 = vld [vmem:[#allocation5 + $0x60] sm:$0xff]
    %v99 = vld [vmem:[#allocation5 + $0x68] sm:$0xff]
    %v100 = vld [vmem:[#allocation5 + $0x70] sm:$0xff]
    %v101 = vld [vmem:[#allocation5 + $0x78] sm:$0xff]
    %v102 = vld [vmem:[#allocation5 + $0x80] sm:$0xff]
    %v103 = vld [vmem:[#allocation5 + $0x88] sm:$0xff]
    %v104 = vld [vmem:[#allocation5 + $0x90] sm:$0xff]
    %v105 = vld [vmem:[#allocation5 + $0x98] sm:$0xff]
    %v106 = vld [vmem:[#allocation5 + $0xa0] sm:$0xff]
    %v107 = vld [vmem:[#allocation5 + $0xa8] sm:$0xff]
    %v108 = vld [vmem:[#allocation5 + $0xb0] sm:$0xff]
    %v109 = vld [vmem:[#allocation5 + $0xb8] sm:$0xff]
    %v110 = vld [vmem:[#allocation5 + $0xc0] sm:$0xff]
    %v111 = vld [vmem:[#allocation5 + $0xc8] sm:$0xff]
    %v112 = vld [vmem:[#allocation5 + $0xd0] sm:$0xff]
    %v113 = vld [vmem:[#allocation5 + $0xd8] sm:$0xff]
    %v114 = vld [vmem:[#allocation5 + $0xe0] sm:$0xff]
    %v115 = vld [vmem:[#allocation5 + $0xe8] sm:$0xff]
    %v116 = vld [vmem:[#allocation5 + $0xf0] sm:$0xff]
    %v117 = vld [vmem:[#allocation5 + $0xf8] sm:$0xff]
    %v118 = vld [vmem:[%s2] sm:$0x1]
    %v120 = vlaneseq
    %v121 = vshrl.u32 %v120, 7
    %v122 = vsub.s32 0, %v121
    %v123 = vrot.slane %v118, %v122
    %125 = vmatprep.subr.mxu0 0.0
    %126 = vmatpush1.msra.mxu0 %v101
    %127 = vmatprep.subr.mxu0 0.0
    %128 = vmatpush1.msra.mxu0 %v100
    %129 = vmatprep.subr.mxu0 0.0
    %130 = vmatpush1.msra.mxu0 %v99
    %131 = vmatprep.subr.mxu0 0.0
    %132 = vmatpush1.msra.mxu0 %v98
    %133 = vmatprep.subr.mxu0 0.0
    %134 = vmatpush1.msra.mxu0 %v97
    %135 = vmatprep.subr.mxu0 0.0
    %136 = vmatpush1.msra.mxu0 %v96
    %137 = vmatprep.subr.mxu0 0.0
    %138 = vmatpush1.msra.mxu0 %v95
    %139 = vmatprep.subr.mxu0 0.0
    %140 = vmatpush1.msra.mxu0 %v94
    %141 = vmatprep.subr.mxu0 0.0
    %142 = vmatpush1.msra.mxu0 %v93
    %143 = vmatprep.subr.mxu0 0.0
    %144 = vmatpush1.msra.mxu0 %v92
    %145 = vmatprep.subr.mxu0 0.0
    %146 = vmatpush1.msra.mxu0 %v91
    %147 = vmatprep.subr.mxu0 0.0
    %148 = vmatpush1.msra.mxu0 %v90
    %149 = vmatprep.subr.mxu0 0.0
    %150 = vmatpush1.msra.mxu0 %v89
    %151 = vmatprep.subr.mxu0 0.0
    %152 = vmatpush1.msra.mxu0 %v88
    %153 = vmatprep.subr.mxu0 0.0
    %154 = vmatpush1.msra.mxu0 %v87
    %155 = vmatprep.subr.mxu0 0.0
    %156 = vmatpush1.msra.mxu0 %v86
    %157 = vmatprep.subr.mxu0 0.0
    %158 = vmatpush2.msra.mxu0 %v117
    %159 = vmatprep.subr.mxu0 0.0
    %160 = vmatpush2.msra.mxu0 %v116
    %161 = vmatprep.subr.mxu0 0.0
    %162 = vmatpush2.msra.mxu0 %v115
    %163 = vmatprep.subr.mxu0 0.0
    %164 = vmatpush2.msra.mxu0 %v114
    %165 = vmatprep.subr.mxu0 0.0
    %166 = vmatpush2.msra.mxu0 %v113
    %167 = vmatprep.subr.mxu0 0.0
    %168 = vmatpush2.msra.mxu0 %v112
    %169 = vmatprep.subr.mxu0 0.0
    %170 = vmatpush2.msra.mxu0 %v111
    %171 = vmatprep.subr.mxu0 0.0
    %172 = vmatpush2.msra.mxu0 %v110
    %173 = vmatprep.subr.mxu0 0.0
    %174 = vmatpush2.msra.mxu0 %v109
    %175 = vmatprep.subr.mxu0 0.0
    %176 = vmatpush2.msra.mxu0 %v108
    %177 = vmatprep.subr.mxu0 0.0
    %178 = vmatpush2.msra.mxu0 %v107
    %179 = vmatprep.subr.mxu0 0.0
    %180 = vmatpush2.msra.mxu0 %v106
    %181 = vmatprep.subr.mxu0 0.0
    %182 = vmatpush2.msra.mxu0 %v105
    %183 = vmatprep.subr.mxu0 0.0
    %184 = vmatpush2.msra.mxu0 %v104
    %185 = vmatprep.subr.mxu0 0.0
    %186 = vmatpush2.msra.mxu0 %v103
    %187 = vmatprep.subr.mxu0 0.0
    %188 = vmatpush2.msra.mxu0 %v102
    %189 = vmatprep.mubr.f32.mxu0 %v83
    %190 = vmatmul.mubr.f32.gmra.mxu0 %v82
    %v191 = vpop.f32.mrf.mxu0
    %v192 = vadd.f32 %v123, %v191
    %v193 = vpop.f32.mrf.mxu0
    %194 = vmatprep.mubr.f32.mxu0 %v85
    %195 = vmatmul.mubr.f32.gmra.mxu0 %v84
    %v196 = vpop.f32.mrf.mxu0
    %v197 = vadd.f32 %v123, %v196
    %v198 = vpop.f32.mrf.mxu0
    %199 = vdwg.mxu0
    %v200 = vmax.f32 %v192, 0.0
    %v201 = vmax.f32 %v197, 0.0
    %v202 = vld [vmem:[#allocation7] sm:$0xff]
    %v203 = vld [vmem:[#allocation7 + $0x8] sm:$0xff]
    %v204 = vld [vmem:[#allocation7 + $0x10] sm:$0xff]
    %v205 = vld [vmem:[#allocation7 + $0x18] sm:$0xff]
    %v206 = vld [vmem:[#allocation7 + $0x20] sm:$0xff]
    %v207 = vld [vmem:[#allocation7 + $0x28] sm:$0xff]
    %v208 = vld [vmem:[#allocation7 + $0x30] sm:$0xff]
    %v209 = vld [vmem:[#allocation7 + $0x38] sm:$0xff]
    %v210 = vld [vmem:[#allocation7 + $0x40] sm:$0xff]
    %v211 = vld [vmem:[#allocation7 + $0x48] sm:$0xff]
    %v212 = vld [vmem:[#allocation7 + $0x50] sm:$0xff]
    %v213 = vld [vmem:[#allocation7 + $0x58] sm:$0xff]
    %v214 = vld [vmem:[#allocation7 + $0x60] sm:$0xff]
    %v215 = vld [vmem:[#allocation7 + $0x68] sm:$0xff]
    %v216 = vld [vmem:[#allocation7 + $0x70] sm:$0xff]
    %v217 = vld [vmem:[#allocation7 + $0x78] sm:$0xff]
    %v218 = vld [vmem:[%s4] sm:$0x1]
    %v220 = vlaneseq
    %v221 = vshrl.u32 %v220, 7
    %v222 = vsub.s32 0, %v221
    %v223 = vrot.slane %v218, %v222
    %225 = vmatprep.subr.mxu0 0.0
    %226 = vmatpush1.msra.mxu0 %v217
    %227 = vmatprep.subr.mxu0 0.0
    %228 = vmatpush1.msra.mxu0 %v216
    %229 = vmatprep.subr.mxu0 0.0
    %230 = vmatpush1.msra.mxu0 %v215
    %231 = vmatprep.subr.mxu0 0.0
    %232 = vmatpush1.msra.mxu0 %v214
    %233 = vmatprep.subr.mxu0 0.0
    %234 = vmatpush1.msra.mxu0 %v213
    %235 = vmatprep.subr.mxu0 0.0
    %236 = vmatpush1.msra.mxu0 %v212
    %237 = vmatprep.subr.mxu0 0.0
    %238 = vmatpush1.msra.mxu0 %v211
    %239 = vmatprep.subr.mxu0 0.0
    %240 = vmatpush1.msra.mxu0 %v210
    %241 = vmatprep.subr.mxu0 0.0
    %242 = vmatpush1.msra.mxu0 %v209
    %243 = vmatprep.subr.mxu0 0.0
    %244 = vmatpush1.msra.mxu0 %v208
    %245 = vmatprep.subr.mxu0 0.0
    %246 = vmatpush1.msra.mxu0 %v207
    %247 = vmatprep.subr.mxu0 0.0
    %248 = vmatpush1.msra.mxu0 %v206
    %249 = vmatprep.subr.mxu0 0.0
    %250 = vmatpush1.msra.mxu0 %v205
    %251 = vmatprep.subr.mxu0 0.0
    %252 = vmatpush1.msra.mxu0 %v204
    %253 = vmatprep.subr.mxu0 0.0
    %254 = vmatpush1.msra.mxu0 %v203
    %255 = vmatprep.subr.mxu0 0.0
    %256 = vmatpush1.msra.mxu0 %v202
    %257 = vmatprep.subr.mxu0 0.0
    %258 = vmatpush2.msra.mxu0 0.0
    %259 = vmatprep.subr.mxu0 0.0
    %260 = vmatpush2.msra.mxu0 0.0
    %261 = vmatprep.subr.mxu0 0.0
    %262 = vmatpush2.msra.mxu0 0.0
    %263 = vmatprep.subr.mxu0 0.0
    %264 = vmatpush2.msra.mxu0 0.0
    %265 = vmatprep.subr.mxu0 0.0
    %266 = vmatpush2.msra.mxu0 0.0
    %267 = vmatprep.subr.mxu0 0.0
    %268 = vmatpush2.msra.mxu0 0.0
    %269 = vmatprep.subr.mxu0 0.0
    %270 = vmatpush2.msra.mxu0 0.0
    %271 = vmatprep.subr.mxu0 0.0
    %272 = vmatpush2.msra.mxu0 0.0
    %273 = vmatprep.subr.mxu0 0.0
    %274 = vmatpush2.msra.mxu0 0.0
    %275 = vmatprep.subr.mxu0 0.0
    %276 = vmatpush2.msra.mxu0 0.0
    %277 = vmatprep.subr.mxu0 0.0
    %278 = vmatpush2.msra.mxu0 0.0
    %279 = vmatprep.subr.mxu0 0.0
    %280 = vmatpush2.msra.mxu0 0.0
    %281 = vmatprep.subr.mxu0 0.0
    %282 = vmatpush2.msra.mxu0 0.0
    %283 = vmatprep.subr.mxu0 0.0
    %284 = vmatpush2.msra.mxu0 0.0
    %285 = vmatprep.subr.mxu0 0.0
    %286 = vmatpush2.msra.mxu0 0.0
    %287 = vmatprep.subr.mxu0 0.0
    %288 = vmatpush2.msra.mxu0 0.0
    %289 = vmatprep.mubr.f32.mxu0 0.0
    %290 = vmatmul.mubr.f32.gmra.mxu0 %v200
    %v291 = vpop.f32.mrf.mxu0
    %v292 = vadd.f32 %v223, %v291
    %v293 = vpop.f32.mrf.mxu0
    %294 = vmatprep.mubr.f32.mxu0 0.0
    %295 = vmatmul.mubr.f32.gmra.mxu0 %v201
    %v296 = vpop.f32.mrf.mxu0
    %v297 = vadd.f32 %v223, %v296
    %v298 = vpop.f32.mrf.mxu0
    %299 = vdwg.mxu0
    %v300 = vmax.f32 %v292, 0.0
    %v301 = vmax.f32 %v297, 0.0
    %v302 = vld [vmem:[#allocation8] sm:$0xff]
    %v303 = vld [vmem:[#allocation8 + $0x8] sm:$0xff]
    %v304 = vld [vmem:[#allocation8 + $0x10] sm:$0xff]
    %v305 = vld [vmem:[#allocation8 + $0x18] sm:$0xff]
    %v306 = vld [vmem:[#allocation8 + $0x20] sm:$0xff]
    %v307 = vld [vmem:[#allocation8 + $0x28] sm:$0xff]
    %v308 = vld [vmem:[#allocation8 + $0x30] sm:$0xff]
    %v309 = vld [vmem:[#allocation8 + $0x38] sm:$0xff]
    %v310 = vld [vmem:[#allocation8 + $0x40] sm:$0xff]
    %v311 = vld [vmem:[#allocation8 + $0x48] sm:$0xff]
    %v312 = vld [vmem:[#allocation8 + $0x50] sm:$0xff]
    %v313 = vld [vmem:[#allocation8 + $0x58] sm:$0xff]
    %v314 = vld [vmem:[#allocation8 + $0x60] sm:$0xff]
    %v315 = vld [vmem:[#allocation8 + $0x68] sm:$0xff]
    %v316 = vld [vmem:[#allocation8 + $0x70] sm:$0xff]
    %v317 = vld [vmem:[#allocation8 + $0x78] sm:$0xff]
    %v318 = vld [vmem:[#allocation8 + $0x80] sm:$0xff]
    %v319 = vld [vmem:[#allocation8 + $0x88] sm:$0xff]
    %v320 = vld [vmem:[#allocation8 + $0x90] sm:$0xff]
    %v321 = vld [vmem:[#allocation8 + $0x98] sm:$0xff]
    %v322 = vld [vmem:[#allocation8 + $0xa0] sm:$0xff]
    %v323 = vld [vmem:[#allocation8 + $0xa8] sm:$0xff]
    %v324 = vld [vmem:[#allocation8 + $0xb0] sm:$0xff]
    %v325 = vld [vmem:[#allocation8 + $0xb8] sm:$0xff]
    %v326 = vld [vmem:[#allocation8 + $0xc0] sm:$0xff]
    %v327 = vld [vmem:[#allocation8 + $0xc8] sm:$0xff]
    %v328 = vld [vmem:[#allocation8 + $0xd0] sm:$0xff]
    %v329 = vld [vmem:[#allocation8 + $0xd8] sm:$0xff]
    %v330 = vld [vmem:[#allocation8 + $0xe0] sm:$0xff]
    %v331 = vld [vmem:[#allocation8 + $0xe8] sm:$0xff]
    %v332 = vld [vmem:[#allocation8 + $0xf0] sm:$0xff]
    %v333 = vld [vmem:[#allocation8 + $0xf8] sm:$0xff]
    %v334 = vld [vmem:[%s6] sm:$0x3]
    %v336 = vlaneseq
    %v337 = vshrl.u32 %v336, 7
    %v338 = vsub.s32 0, %v337
    %v339 = vrot.slane %v334, %v338
    %v340 = vlaneseq
    %v341 = vshrl.u32 %v340, 7
    %v342 = vsub.s32 1, %v341
    %v343 = vrot.slane %v334, %v342
    %346 = vmatprep.subr.mxu0 %v333
    %347 = vmatpush1.msra.mxu0 %v332
    %348 = vmatprep.subr.mxu0 %v331
    %349 = vmatpush1.msra.mxu0 %v330
    %350 = vmatprep.subr.mxu0 %v329
    %351 = vmatpush1.msra.mxu0 %v328
    %352 = vmatprep.subr.mxu0 %v327
    %353 = vmatpush1.msra.mxu0 %v326
    %354 = vmatprep.subr.mxu0 %v325
    %355 = vmatpush1.msra.mxu0 %v324
    %356 = vmatprep.subr.mxu0 %v323
    %357 = vmatpush1.msra.mxu0 %v322
    %358 = vmatprep.subr.mxu0 %v321
    %359 = vmatpush1.msra.mxu0 %v320
    %360 = vmatprep.subr.mxu0 %v319
    %361 = vmatpush1.msra.mxu0 %v318
    %362 = vmatprep.subr.mxu0 %v317
    %363 = vmatpush1.msra.mxu0 %v316
    %364 = vmatprep.subr.mxu0 %v315
    %365 = vmatpush1.msra.mxu0 %v314
    %366 = vmatprep.subr.mxu0 %v313
    %367 = vmatpush1.msra.mxu0 %v312
    %368 = vmatprep.subr.mxu0 %v311
    %369 = vmatpush1.msra.mxu0 %v310
    %370 = vmatprep.subr.mxu0 %v309
    %371 = vmatpush1.msra.mxu0 %v308
    %372 = vmatprep.subr.mxu0 %v307
    %373 = vmatpush1.msra.mxu0 %v306
    %374 = vmatprep.subr.mxu0 %v305
    %375 = vmatpush1.msra.mxu0 %v304
    %376 = vmatprep.subr.mxu0 %v303
    %377 = vmatpush1.msra.mxu0 %v302
    %378 = vmatprep.subr.mxu0 0.0
    %379 = vmatpush2.msra.mxu0 0.0
    %380 = vmatprep.subr.mxu0 0.0
    %381 = vmatpush2.msra.mxu0 0.0
    %382 = vmatprep.subr.mxu0 0.0
    %383 = vmatpush2.msra.mxu0 0.0
    %384 = vmatprep.subr.mxu0 0.0
    %385 = vmatpush2.msra.mxu0 0.0
    %386 = vmatprep.subr.mxu0 0.0
    %387 = vmatpush2.msra.mxu0 0.0
    %388 = vmatprep.subr.mxu0 0.0
    %389 = vmatpush2.msra.mxu0 0.0
    %390 = vmatprep.subr.mxu0 0.0
    %391 = vmatpush2.msra.mxu0 0.0
    %392 = vmatprep.subr.mxu0 0.0
    %393 = vmatpush2.msra.mxu0 0.0
    %394 = vmatprep.subr.mxu0 0.0
    %395 = vmatpush2.msra.mxu0 0.0
    %396 = vmatprep.subr.mxu0 0.0
    %397 = vmatpush2.msra.mxu0 0.0
    %398 = vmatprep.subr.mxu0 0.0
    %399 = vmatpush2.msra.mxu0 0.0
    %400 = vmatprep.subr.mxu0 0.0
    %401 = vmatpush2.msra.mxu0 0.0
    %402 = vmatprep.subr.mxu0 0.0
    %403 = vmatpush2.msra.mxu0 0.0
    %404 = vmatprep.subr.mxu0 0.0
    %405 = vmatpush2.msra.mxu0 0.0
    %406 = vmatprep.subr.mxu0 0.0
    %407 = vmatpush2.msra.mxu0 0.0
    %408 = vmatprep.subr.mxu0 0.0
    %409 = vmatpush2.msra.mxu0 0.0
    %410 = vmatprep.mubr.f32.mxu0 0.0
    %411 = vmatmul.mubr.f32.gmra.mxu0 %v300
    %v412 = vpop.f32.mrf.mxu0
    %v413 = vadd.f32 %v339, %v412
    %v414 = vpop.f32.mrf.mxu0
    %v415 = vadd.f32 %v343, %v414
    %416 = vmatprep.mubr.f32.mxu0 0.0
    %417 = vmatmul.mubr.f32.gmra.mxu0 %v301
    %v418 = vpop.f32.mrf.mxu0
    %v419 = vadd.f32 %v339, %v418
    %v420 = vpop.f32.mrf.mxu0
    %v421 = vadd.f32 %v343, %v420
    %422 = vdwg.mxu0
    %v423 = vadd.f32 %v413, %v82
    %v424 = vadd.f32 %v415, %v83
    %v425 = vadd.f32 %v419, %v84
    %v426 = vadd.f32 %v421, %v85
    %427 = vst [vmem:[#allocation10] sm:$0xff] %v423
    %428 = vst [vmem:[#allocation10 + $0x8] sm:$0xff] %v424
    %429 = vst [vmem:[#allocation10 + $0x10] sm:$0xff] %v425
    %430 = vst [vmem:[#allocation10 + $0x18] sm:$0xff] %v426
    // Predicated region
    $region46: #{tpu_custom_call.1} parent=1 // pred_check
      _
    $region47: #{tpu_custom_call.1} parent=1 // pred_check_branch
      %432 = sbr.rel (0) target = $region49
    $region48: #{tpu_custom_call.1} parent=1 // pred_region
      %s434 = ssub.s32 512, 512
      %435 = vsyncadd [#allocation4], %s434
      %s436 = sshll.u32 [#allocation10], 4
      %s437 = int_to_ptr.vmem [resolvable:$true] %s436
      %442 = dma.vmem_to_hbm [thread:$0]  %s437, 512, %s7, [#allocation4], 256, 256, 16
    $region49: #{tpu_custom_call.1} parent=1 // pred_fallthru
      _
    // Predicated region
    $region50: #{tpu_custom_call.1} parent=1 // pred_check
      _
    $region51: #{tpu_custom_call.1} parent=1 // pred_check_branch
      %444 = sbr.rel (0) target = $region53
    $region52: #{tpu_custom_call.1} parent=1 // pred_region
      %445 = dma.done [#allocation4], 512
    $region53: #{tpu_custom_call.1} parent=1 // pred_fallthru
      _
    %446 = vsyncpa [#allocation3], 1
    %447 = vsyncpa [#allocation6], 1
    %448 = vsyncpa [#allocation9], 1
    %449 = vsyncpa [#allocation4], 1

</llo_original>
